<compile_context>
chip_gen: v6e
topology: v6e:2x2x1
jax: 0.10.0
libtpu: 0.0.40
codegen_flags: <defaults>
</compile_context>

<pallas_src>
import jax
import jax.numpy as jnp
from jax.experimental import pallas as pl
from jax.experimental.pallas import tpu as pltpu


def _transpose_kernel(x_ref, o_ref):
    # Input block (tm, tn) -> matching (tn, tm) output block.
    o_ref[...] = x_ref[...].T


def _round_up(x: int, m: int) -> int:
    return ((x + m - 1) // m) * m


def _pick_tile(dim_padded: int, cap: int = 1024) -> int:
    """Largest multiple of 128 that divides dim_padded (itself a 128-multiple) and is <= cap."""
    best = 128
    t = 128
    limit = min(dim_padded, cap)
    while t <= limit:
        if dim_padded % t == 0:
            best = t
        t += 128
    return best


@jax.jit
def pallas_transpose(x: jax.Array) -> jax.Array:
    """torch.t semantics: identity for ndim <= 1, 2-D transpose otherwise."""
    if x.ndim <= 1:
        return x
    assert x.ndim == 2, "torch.t requires a <=2-D tensor"
    M, N = x.shape
    itemsize = jnp.dtype(x.dtype).itemsize

    # Both M and N appear as a lane dim (128) in one block and a sublane dim in the
    # other, so align both to 128 (also covers bf16/int8 sublane packing).
    Mp = _round_up(M, 128)
    Np = _round_up(N, 128)
    tm = _pick_tile(Mp)
    tn = _pick_tile(Np)

    x_in = x
    if (Mp, Np) != (M, N):
        # Thin pad only up to 128-multiples; result is sliced back afterwards.
        x_in = jnp.pad(x, ((0, Mp - M), (0, Np - N)))

    tile_bytes = tm * tn * itemsize
    # Double-buffered input tile + output tile, plus compiler headroom.
    vmem_limit = int(min(max(4 * tile_bytes + (8 << 20), 32 << 20), 64 << 20))

    # Grid: j over output rows (N blocks), i over output cols (M blocks); i (last
    # grid axis) iterates fastest so successive output DMAs walk the output's
    # last (lane-dense) dimension.
    grid = (Np // tn, Mp // tm)

    out_padded = pl.pallas_call(
        _transpose_kernel,
        out_shape=jax.ShapeDtypeStruct((Np, Mp), x.dtype),
        grid_spec=pltpu.PrefetchScalarGridSpec(
            num_scalar_prefetch=0,
            grid=grid,
            in_specs=[pl.BlockSpec((tm, tn), lambda j, i: (i, j))],
            # Output tile (j, i) of shape (tn, tm) = transpose of input tile (i, j).
            out_specs=pl.BlockSpec((tn, tm), lambda j, i: (j, i)),
        ),
        compiler_params=pltpu.CompilerParams(
            dimension_semantics=("parallel", "parallel"),
            vmem_limit_bytes=vmem_limit,
        ),
        cost_estimate=pl.CostEstimate(
            flops=0,
            transcendentals=0,
            bytes_accessed=2 * M * N * itemsize,
        ),
    )(x_in)

    if (Mp, Np) != (M, N):
        return out_padded[:N, :M]
    return out_padded


if __name__ == "__main__":
    key = jax.random.PRNGKey(0)

    # Small 2-D input consistent with torch.t: seq=8, hidden=32 (padded path).
    x = jax.random.normal(key, (8, 32), dtype=jnp.float32)
    out = jax.block_until_ready(pallas_transpose(x))
    assert out.shape == (32, 8)
    assert jnp.array_equal(out, x.T), "transpose mismatch (small / padded path)"

    # Aligned single-tile path (no padding).
    x2 = jax.random.normal(jax.random.PRNGKey(1), (512, 1024), dtype=jnp.float32)
    out2 = jax.block_until_ready(pallas_transpose(x2))
    assert out2.shape == (1024, 512)
    assert jnp.array_equal(out2, x2.T), "transpose mismatch (aligned path)"

    # Multi-tile aligned path (no padding, grid > 1 step).
    x3 = jax.random.normal(jax.random.PRNGKey(2), (1024, 1536), dtype=jnp.float32)
    out3 = jax.block_until_ready(pallas_transpose(x3))
    assert out3.shape == (1536, 1024)
    assert jnp.array_equal(out3, x3.T), "transpose mismatch (multi-tile path)"

    # Unaligned shape exercising the thin 128-pad + slice path.
    x4 = jax.random.normal(jax.random.PRNGKey(3), (200, 384), dtype=jnp.float32)
    out4 = jax.block_until_ready(pallas_transpose(x4))
    assert out4.shape == (384, 200)
    assert jnp.array_equal(out4, x4.T), "transpose mismatch (unaligned path)"

    print("KERNEL_OK")
</pallas_src>

<mosaic_0001>
module attributes {stable_mosaic.version = 11 : i64} {
  func.func @_transpose_kernel(%arg0: i32, %arg1: i32, %arg2: memref<128x128xf32, #tpu.memory_space<vmem>>, %arg3: memref<128x128xf32, #tpu.memory_space<vmem>>) attributes {dimension_semantics = [#tpu.dimension_semantics<parallel>, #tpu.dimension_semantics<parallel>], iteration_bounds = array<i64: 1, 1>, scalar_prefetch = 0 : i64, scratch_operands = 0 : i64, tpu.core_type = #tpu.core_type<tc>, window_params = [{transform_indices = @transform_0, window_bounds = array<i64: 128, 128>}, {transform_indices = @transform_1, window_bounds = array<i64: 128, 128>}]} {
    %c0 = arith.constant 0 : index
    %c0_0 = arith.constant 0 : index
    %0 = vector.load %arg2[%c0, %c0_0] : memref<128x128xf32, #tpu.memory_space<vmem>>, vector<128x128xf32>
    %1 = tpu.transpose %0, [1, 0] : vector<128x128xf32> -> vector<128x128xf32>
    %c0_1 = arith.constant 0 : index
    %c0_2 = arith.constant 0 : index
    %2 = vector.load %arg3[%c0_1, %c0_2] : memref<128x128xf32, #tpu.memory_space<vmem>>, vector<128x128xf32>
    tpu.vector_store %arg3[%c0_1, %c0_2], %1 {strides = array<i32>} : memref<128x128xf32, #tpu.memory_space<vmem>>, vector<128x128xf32>,
    return
  }
  func.func @transform_0(%arg0: i32, %arg1: i32) -> (i32, i32) {
    %c0_i32 = arith.constant 0 : i32
    return %arg1, %arg0 : i32, i32
  }
  func.func @transform_1(%arg0: i32, %arg1: i32) -> (i32, i32) {
    %c0_i32 = arith.constant 0 : i32
    return %arg0, %arg1 : i32, i32
  }
}

</mosaic_0001>

<llo_original>
// kernel: pallas_transpose.1
$region0: #{pallas_transpose.1}
  #allocation0 [shape = 'u32[]', space=smem, size = 0x4, offset = 0x4, fixed_abs, tag = 'smem constant byte address 0x4 - core index']
  #allocation1 [shape = 'u32[144,128]{1,0:T(1,128)}', space=vmem, size = 0x12000, scoped, tag = 'internal scratch']
  %s0 = inlined_call_operand.vmem [shape: f32[128,128], index: 0, kind: input, shape index: {}]
  %s1 = inlined_call_operand.vmem [shape: f32[128,128], index: 1, kind: output, shape index: {}]
  %s2 = sld [smem:[#allocation0]]
  $region14: #{pallas_transpose.1} parent=0
    _
  %s4 = ssub.s32 1, %s2
  %s5 = scalar_select 0, %s4, %s2
  // Predicated region
  $region2: #{pallas_transpose.1} parent=0 // pred_check
    _
  $region3: #{pallas_transpose.1} parent=0 // pred_check_branch
    %7 = sbr.rel (0) target = $region5
  $region4: #{pallas_transpose.1} parent=0 // pred_region
    _
  $region5: #{pallas_transpose.1} parent=0 // pred_fallthru
    _
  %v8 = vld [vmem:[%s0] sm:$0xff]
  %v9 = vld [vmem:[%s0 + $0x8] sm:$0xff]
  %v10 = vld [vmem:[%s0 + $0x10] sm:$0xff]
  %v11 = vld [vmem:[%s0 + $0x18] sm:$0xff]
  %v12 = vld [vmem:[%s0 + $0x20] sm:$0xff]
  %v13 = vld [vmem:[%s0 + $0x28] sm:$0xff]
  %v14 = vld [vmem:[%s0 + $0x30] sm:$0xff]
  %v15 = vld [vmem:[%s0 + $0x38] sm:$0xff]
  %v16 = vld [vmem:[%s0 + $0x40] sm:$0xff]
  %v17 = vld [vmem:[%s0 + $0x48] sm:$0xff]
  %v18 = vld [vmem:[%s0 + $0x50] sm:$0xff]
  %v19 = vld [vmem:[%s0 + $0x58] sm:$0xff]
  %v20 = vld [vmem:[%s0 + $0x60] sm:$0xff]
  %v21 = vld [vmem:[%s0 + $0x68] sm:$0xff]
  %v22 = vld [vmem:[%s0 + $0x70] sm:$0xff]
  %v23 = vld [vmem:[%s0 + $0x78] sm:$0xff]
  %24 = vxpose.xlu0.b32.start [1/16] %v8, 128
  %25 = vxpose.xlu0.b32.cont [2/16] %v9, 128
  %26 = vxpose.xlu0.b32.cont [3/16] %v10, 128
  %27 = vxpose.xlu0.b32.cont [4/16] %v11, 128
  %28 = vxpose.xlu0.b32.cont [5/16] %v12, 128
  %29 = vxpose.xlu0.b32.cont [6/16] %v13, 128
  %30 = vxpose.xlu0.b32.cont [7/16] %v14, 128
  %31 = vxpose.xlu0.b32.cont [8/16] %v15, 128
  %32 = vxpose.xlu0.b32.cont [9/16] %v16, 128
  %33 = vxpose.xlu0.b32.cont [10/16] %v17, 128
  %34 = vxpose.xlu0.b32.cont [11/16] %v18, 128
  %35 = vxpose.xlu0.b32.cont [12/16] %v19, 128
  %36 = vxpose.xlu0.b32.cont [13/16] %v20, 128
  %37 = vxpose.xlu0.b32.cont [14/16] %v21, 128
  %38 = vxpose.xlu0.b32.cont [15/16] %v22, 128
  %39 = vxpose.xlu0.b32.end [16/16] %v23, 128
  %v40 = vpop.trf.xlu0
  %v41 = vpop.trf.xlu0
  %v42 = vpop.trf.xlu0
  %v43 = vpop.trf.xlu0
  %v44 = vpop.trf.xlu0
  %v45 = vpop.trf.xlu0
  %v46 = vpop.trf.xlu0
  %v47 = vpop.trf.xlu0
  %v48 = vpop.trf.xlu0
  %v49 = vpop.trf.xlu0
  %v50 = vpop.trf.xlu0
  %v51 = vpop.trf.xlu0
  %v52 = vpop.trf.xlu0
  %v53 = vpop.trf.xlu0
  %v54 = vpop.trf.xlu0
  %v55 = vpop.trf.xlu0
  %56 = vst [vmem:[%s1] sm:$0xff] %v40
  %57 = vst [vmem:[%s1 + $0x8] sm:$0xff] %v41
  %58 = vst [vmem:[%s1 + $0x10] sm:$0xff] %v42
  %59 = vst [vmem:[%s1 + $0x18] sm:$0xff] %v43
  %60 = vst [vmem:[%s1 + $0x20] sm:$0xff] %v44
  %61 = vst [vmem:[%s1 + $0x28] sm:$0xff] %v45
  %62 = vst [vmem:[%s1 + $0x30] sm:$0xff] %v46
  %63 = vst [vmem:[%s1 + $0x38] sm:$0xff] %v47
  %64 = vst [vmem:[%s1 + $0x40] sm:$0xff] %v48
  %65 = vst [vmem:[%s1 + $0x48] sm:$0xff] %v49
  %66 = vst [vmem:[%s1 + $0x50] sm:$0xff] %v50
  %67 = vst [vmem:[%s1 + $0x58] sm:$0xff] %v51
  %68 = vst [vmem:[%s1 + $0x60] sm:$0xff] %v52
  %69 = vst [vmem:[%s1 + $0x68] sm:$0xff] %v53
  %70 = vst [vmem:[%s1 + $0x70] sm:$0xff] %v54
  %71 = vst [vmem:[%s1 + $0x78] sm:$0xff] %v55
  // Predicated region
  $region6: #{pallas_transpose.1} parent=0 // pred_check
    _
  $region7: #{pallas_transpose.1} parent=0 // pred_check_branch
    %73 = sbr.rel (0) target = $region9
  $region8: #{pallas_transpose.1} parent=0 // pred_region
    _
  $region9: #{pallas_transpose.1} parent=0 // pred_fallthru
    _
  // Predicated region
  $region10: #{pallas_transpose.1} parent=0 // pred_check
    _
  $region11: #{pallas_transpose.1} parent=0 // pred_check_branch
    %75 = sbr.rel (0) target = $region13
  $region12: #{pallas_transpose.1} parent=0 // pred_region
    _
  $region13: #{pallas_transpose.1} parent=0 // pred_fallthru
    _

</llo_original>
